<compile_context>
chip_gen: v6e
topology: v6e:2x2x1
jax: 0.10.0
libtpu: 0.0.40
codegen_flags: <defaults>
</compile_context>

<pallas_src>
import functools
import math

import jax
import jax.numpy as jnp
from jax import lax
from jax.experimental import pallas as pl
from jax.experimental.pallas import tpu as pltpu

# ------------------------------ tiling constants ------------------------------
TM = 512                         # activation rows streamed per grid step
LANE = 128                       # K / N padded to multiples of 128 (lane-dense)
PALLAS_MIN_M = 512               # below this, padded MXU tiles waste work -> plain XLA
NORM_MIN_L = 1024                # InstanceNorm rows shorter than this -> plain XLA
NORM_ROWS = 32                   # rows per InstanceNorm grid step
VMEM_LIMIT = 32 * 1024 * 1024    # explicit budget; safe down to v7x's 64 MiB VMEM


def _round_up(x, m):
    return (x + m - 1) // m * m


# ----------------------------------------------------------------------------
# Pallas kernels
# ----------------------------------------------------------------------------
def _fused_mm_kernel(a_ref, b_ref, scale_ref, shift_ref, o_ref, *, act):
    # (TM, Kp) bf16 @ (Kp, Np) bf16 (weight resident in VMEM) -> f32 accumulate,
    # with per-output-channel scale/shift + activation fused into the epilogue
    # (VPU work is free under the MXU).
    acc = jnp.dot(a_ref[...], b_ref[...], preferred_element_type=jnp.float32)
    y = acc * scale_ref[...] + shift_ref[...]
    if act == "relu":
        y = jnp.maximum(y, 0.0)
    elif act == "leaky":
        y = jnp.where(y >= 0.0, y, 0.01 * y)
    o_ref[...] = y.astype(o_ref.dtype)


def _pallas_fused_mm(a_p, w_p, scale_p, shift_p, act, tm):
    Mp, Kp = a_p.shape
    Np = w_p.shape[1]
    return pl.pallas_call(
        functools.partial(_fused_mm_kernel, act=act),
        out_shape=jax.ShapeDtypeStruct((Mp, Np), jnp.float32),
        grid=(Mp // tm,),
        in_specs=[
            pl.BlockSpec((tm, Kp), lambda i: (i, 0)),   # streamed activation tiles
            pl.BlockSpec((Kp, Np), lambda i: (0, 0)),   # weight: DMA'd once, resident
            pl.BlockSpec((1, Np), lambda i: (0, 0)),    # per-channel scale
            pl.BlockSpec((1, Np), lambda i: (0, 0)),    # per-channel shift
        ],
        out_specs=pl.BlockSpec((tm, Np), lambda i: (i, 0)),
        compiler_params=pltpu.CompilerParams(
            dimension_semantics=("parallel",),          # M grid shards across TCs (v7x)
            vmem_limit_bytes=VMEM_LIMIT),
    )(a_p, w_p, scale_p, shift_p)


def fused_matmul(a, w_p, scale, shift, act="none"):
    """a: (M, K) activations; w_p: (Kp, Np) pre-padded bf16 weight;
    scale/shift: (cout,) f32 epilogue.  Returns (M, cout) f32 = act(a @ w * scale + shift)."""
    M, K = a.shape
    Kp, Np = w_p.shape
    cout = scale.shape[0]
    a = a.astype(jnp.bfloat16)
    if M >= PALLAS_MIN_M:
        Mp = _round_up(M, TM)
        a_p = jnp.pad(a, ((0, Mp - M), (0, Kp - K)))
        scale_p = jnp.pad(scale, (0, Np - cout)).reshape(1, Np)
        shift_p = jnp.pad(shift, (0, Np - cout)).reshape(1, Np)
        out = _pallas_fused_mm(a_p, w_p, scale_p, shift_p, act, TM)
        return out[:M, :cout]
    # Tiny matmul: let XLA fuse it (perf review: don't pad tiny matrices to MXU tiles).
    y = jnp.dot(jnp.pad(a, ((0, 0), (0, Kp - K))), w_p,
                preferred_element_type=jnp.float32)[:, :cout]
    y = y * scale[None, :] + shift[None, :]
    if act == "relu":
        y = jnp.maximum(y, 0.0)
    elif act == "leaky":
        y = jnp.where(y >= 0.0, y, 0.01 * y)
    return y


def _instnorm_kernel(x_ref, o_ref, *, relu):
    x = x_ref[...].astype(jnp.float32)
    inv_n = 1.0 / x.shape[-1]
    mean = jnp.sum(x, axis=-1, keepdims=True) * inv_n
    var = jnp.sum(x * x, axis=-1, keepdims=True) * inv_n - mean * mean  # single pass
    y = (x - mean) * lax.rsqrt(jnp.maximum(var, 0.0) + 1e-5)
    if relu:
        y = jnp.maximum(y, 0.0)
    o_ref[...] = y.astype(o_ref.dtype)


def instance_norm3d(x, relu=True):
    """nn.InstanceNorm3d(affine=False, eps=1e-5, biased variance) (+ optional ReLU)."""
    B, C, T, H, W = x.shape
    L = T * H * W
    R = B * C
    x2 = x.reshape(R, L)
    if L < NORM_MIN_L:
        # tiny spatial extent: plain jnp (fused by XLA under the outer jit)
        mean = jnp.mean(x2, axis=-1, keepdims=True)
        var = jnp.mean(x2 * x2, axis=-1, keepdims=True) - mean * mean
        y = (x2 - mean) * lax.rsqrt(jnp.maximum(var, 0.0) + 1e-5)
        if relu:
            y = jnp.maximum(y, 0.0)
        return y.reshape(B, C, T, H, W)
    Rp = _round_up(R, NORM_ROWS)
    x2p = jnp.pad(x2, ((0, Rp - R), (0, 0)))
    y = pl.pallas_call(
        functools.partial(_instnorm_kernel, relu=relu),
        out_shape=jax.ShapeDtypeStruct((Rp, L), x2.dtype),
        grid=(Rp // NORM_ROWS,),
        in_specs=[pl.BlockSpec((NORM_ROWS, L), lambda i: (i, 0))],
        out_specs=pl.BlockSpec((NORM_ROWS, L), lambda i: (i, 0)),
        compiler_params=pltpu.CompilerParams(
            dimension_semantics=("parallel",),
            vmem_limit_bytes=VMEM_LIMIT),
    )(x2p)[:R]
    return y.reshape(B, C, T, H, W)


# ----------------------------------------------------------------------------
# Convolutions: channels-last im2col (glue) + fused Pallas matmul (hot path)
# ----------------------------------------------------------------------------
def _im2col_3d(x, ks, pad):
    B, C, T, H, W = x.shape
    kt, kh, kw = ks
    pt, ph, pw = pad
    To = T + 2 * pt - kt + 1
    Ho = H + 2 * ph - kh + 1
    Wo = W + 2 * pw - kw + 1
    xc = jnp.transpose(x, (0, 2, 3, 4, 1))            # channels-last (B,T,H,W,C)
    if ks == (1, 1, 1) and pad == (0, 0, 0):
        return xc.reshape(B * T * H * W, C), (To, Ho, Wo)
    xp = jnp.pad(xc, ((0, 0), (pt, pt), (ph, ph), (pw, pw), (0, 0)))
    cols = [xp[:, dt:dt + To, dh:dh + Ho, dw:dw + Wo, :]
            for dt in range(kt) for dh in range(kh) for dw in range(kw)]
    p = jnp.stack(cols, axis=4)                       # (B, To, Ho, Wo, k, C)
    return p.reshape(B * To * Ho * Wo, kt * kh * kw * C), (To, Ho, Wo)


def _im2col_2d(x, ks, pad):
    B, C, H, W = x.shape
    kh, kw = ks
    ph, pw = pad
    Ho = H + 2 * ph - kh + 1
    Wo = W + 2 * pw - kw + 1
    xc = jnp.transpose(x, (0, 2, 3, 1))               # (B,H,W,C)
    if ks == (1, 1) and pad == (0, 0):
        return xc.reshape(B * H * W, C), (Ho, Wo)
    xp = jnp.pad(xc, ((0, 0), (ph, ph), (pw, pw), (0, 0)))
    cols = [xp[:, dh:dh + Ho, dw:dw + Wo, :] for dh in range(kh) for dw in range(kw)]
    p = jnp.stack(cols, axis=3)                       # (B, Ho, Wo, k, C)
    return p.reshape(B * Ho * Wo, kh * kw * C), (Ho, Wo)


def conv3d(x, pw, ks, pad=(0, 0, 0), act="none"):
    """Stride-1 Conv3d (prepared weight `pw`).  x: (B,Cin,T,H,W) f32."""
    B = x.shape[0]
    patches, (To, Ho, Wo) = _im2col_3d(x.astype(jnp.bfloat16), ks, pad)
    cout = pw["scale"].shape[0]
    out = fused_matmul(patches, pw["w"], pw["scale"], pw["shift"], act)
    return out.reshape(B, To, Ho, Wo, cout).transpose(0, 4, 1, 2, 3)


def conv2d(x, pw, ks, pad=(0, 0), act="none"):
    """Stride-1 Conv2d (prepared weight `pw`).  x: (B,Cin,H,W) f32."""
    B = x.shape[0]
    patches, (Ho, Wo) = _im2col_2d(x.astype(jnp.bfloat16), ks, pad)
    cout = pw["scale"].shape[0]
    out = fused_matmul(patches, pw["w"], pw["scale"], pw["shift"], act)
    return out.reshape(B, Ho, Wo, cout).transpose(0, 3, 1, 2)


# ----------------------------------------------------------------------------
# Pooling / elementwise glue
# ----------------------------------------------------------------------------
def maxpool3d_3s2p1(x):
    return lax.reduce_window(
        x, jnp.array(-jnp.inf, x.dtype), lax.max,
        (1, 1, 3, 3, 3), (1, 1, 2, 2, 2),
        ((0, 0), (0, 0), (1, 1), (1, 1), (1, 1)))


def avgpool3d_2s2(x):
    s = lax.reduce_window(
        x, jnp.array(0.0, x.dtype), lax.add,
        (1, 1, 2, 2, 2), (1, 1, 2, 2, 2), "VALID")
    return s / 8.0


def upsample2x(x):  # F.interpolate(scale_factor=2, mode='nearest')
    return jnp.repeat(jnp.repeat(x, 2, axis=2), 2, axis=3)


# ----------------------------------------------------------------------------
# Parameter initialization (deterministic, in-script; weights pre-packed for Pallas)
# ----------------------------------------------------------------------------
GROWTH_RATE = 8
BN_SIZE = 4
BLOCK_CONFIG = (6, 12, 24, 16)
NUM_INIT_FEATURES = 32
N_INPUT_CHANNELS = 1


class KeyGen:
    def __init__(self, seed=0):
        self._key = jax.random.PRNGKey(seed)

    def __call__(self):
        self._key, sub = jax.random.split(self._key)
        return sub


def _conv3d_w(kg, cin, cout, ks):
    fan_out = cout * ks[0] * ks[1] * ks[2]          # kaiming_normal_, mode='fan_out'
    std = math.sqrt(2.0 / fan_out)
    return std * jax.random.normal(kg(), (cout, cin) + tuple(ks), dtype=jnp.float32)


def _conv2d_w(kg, cin, cout, ks):
    fan_in = cin * ks[0] * ks[1]
    std = math.sqrt(1.0 / fan_in)
    return std * jax.random.normal(kg(), (cout, cin) + tuple(ks), dtype=jnp.float32)


def _bias(kg, c):
    return 0.01 * jax.random.normal(kg(), (c,), dtype=jnp.float32)


def prep_conv(w, bias=None, bn=None):
    """Pre-transpose / pre-pad / pre-cast a Conv{2,3}d weight for fused_matmul.
    w: (Cout, Cin, *k) PyTorch layout.  Columns ordered (spatial offset, Cin) to match
    the channels-last im2col.  Optional bias and eval-mode BN (gamma,beta,rm,rv) are
    folded into the per-channel scale/shift epilogue."""
    cout, cin = int(w.shape[0]), int(w.shape[1])
    K = cin * int(math.prod(w.shape[2:]))
    perm = (0,) + tuple(range(2, w.ndim)) + (1,)
    w2 = jnp.transpose(w, perm).reshape(cout, K).T          # (K, Cout)
    Kp, Np = _round_up(K, LANE), _round_up(cout, LANE)
    w_p = jnp.pad(w2, ((0, Kp - K), (0, Np - cout))).astype(jnp.bfloat16)
    scale = jnp.ones((cout,), jnp.float32)
    shift = (jnp.zeros((cout,), jnp.float32) if bias is None
             else bias.astype(jnp.float32))
    if bn is not None:
        gamma, beta, rm, rv = bn
        s = gamma * lax.rsqrt(rv + 1e-5)
        scale = s
        shift = beta - rm * s
    return {"w": w_p, "scale": scale, "shift": shift}


def init_encoder(kg, H, W):
    params = {"stem": prep_conv(_conv3d_w(kg, N_INPUT_CHANNELS, NUM_INIT_FEATURES, (3, 5, 5)))}
    out_size = []
    h, w = H // 2, W // 2
    out_size.append((NUM_INIT_FEATURES, h, w))
    num_features = NUM_INIT_FEATURES
    blocks = []
    for i, num_layers in enumerate(BLOCK_CONFIG):
        layers = []
        for l in range(num_layers):
            cin = num_features + l * GROWTH_RATE
            layers.append({
                "conv1": prep_conv(_conv3d_w(kg, cin, BN_SIZE * GROWTH_RATE, (1, 1, 1))),
                "conv2": prep_conv(_conv3d_w(kg, BN_SIZE * GROWTH_RATE, GROWTH_RATE, (3, 3, 3))),
            })
        num_features += num_layers * GROWTH_RATE
        blk = {"layers": layers}
        if i != len(BLOCK_CONFIG) - 1:
            blk["trans"] = prep_conv(_conv3d_w(kg, num_features, num_features // 2, (1, 1, 1)))
            num_features //= 2
            h, w = h // 2, w // 2
            out_size.append((num_features, h, w))
        blocks.append(blk)
    h, w = h // 2, w // 2
    out_size.append((num_features, h, w))
    params["blocks"] = blocks
    return params, out_size


def init_scse(kg, c):
    cr = max(c // 16, 1)
    return {
        "cse_w1": math.sqrt(1.0 / c) * jax.random.normal(kg(), (c, cr), jnp.float32),
        "cse_b1": _bias(kg, cr),
        "cse_w2": math.sqrt(1.0 / cr) * jax.random.normal(kg(), (cr, c), jnp.float32),
        "cse_b2": _bias(kg, c),
        "sse_w": math.sqrt(1.0 / c) * jax.random.normal(kg(), (c,), jnp.float32),
        "sse_b": 0.01 * jax.random.normal(kg(), (), jnp.float32),
    }


def init_decoder(kg, hidden_dims, out_size):
    step = [list(s) for s in hidden_dims[::-1]] + [list(out_size)]
    modules = []
    c0 = step[0][0]
    # Conv2dReLU(c0, c0, k=1, use_batchnorm=True): conv(no bias) + BN(eval) folded.
    bn_w = 1.0 + 0.01 * jax.random.normal(kg(), (c0,), jnp.float32)
    bn_b = _bias(kg, c0)
    bn_rm = jnp.zeros((c0,), jnp.float32)
    bn_rv = jnp.ones((c0,), jnp.float32)
    modules.append({"conv": prep_conv(_conv2d_w(kg, c0, c0, (1, 1)),
                                      bn=(bn_w, bn_b, bn_rm, bn_rv))})
    for i in range(len(step) - 2):                   # DecoderBlocks with SCSE
        cin, skip = step[i][0], step[i + 1][0]
        cout = step[i + 1][0]
        modules.append({
            "att1": init_scse(kg, cin + skip),
            "conv1": prep_conv(_conv2d_w(kg, cin + skip, cout, (3, 3)), bias=_bias(kg, cout)),
            "conv2": prep_conv(_conv2d_w(kg, cout, cout, (3, 3)), bias=_bias(kg, cout)),
            "att2": init_scse(kg, cout),
        })
    cin, cout = step[-2][0], step[-1][0]             # final DecoderBlock, no skip/attn
    modules.append({
        "conv1": prep_conv(_conv2d_w(kg, cin, cout, (3, 3)), bias=_bias(kg, cout)),
        "conv2": prep_conv(_conv2d_w(kg, cout, cout, (3, 3)), bias=_bias(kg, cout)),
    })
    return modules


def init_model(kg, input_size, output_channel=5):
    C, T, H, W = input_size
    enc_params, out_size = init_encoder(kg, H, W)
    dec_params = init_decoder(kg, out_size, (output_channel, H, W))
    return {"encoder": enc_params, "decoder": dec_params}


# ----------------------------------------------------------------------------
# Forward pass
# ----------------------------------------------------------------------------
def encoder_forward(params, x):
    feat_list = []
    # stem: conv1 (3,5,5) pad (2,2,2) -> InstanceNorm -> ReLU -> MaxPool3d(3, 2, 1)
    x = conv3d(x, params["stem"], ks=(3, 5, 5), pad=(2, 2, 2))
    x = instance_norm3d(x, relu=True)
    x = maxpool3d_3s2p1(x)
    feat_list.append(jnp.mean(x, axis=2))     # AdaptiveAvgPool1d(1) over T

    n_blocks = len(params["blocks"])
    for i, blk in enumerate(params["blocks"]):
        for lp in blk["layers"]:              # _DenseLayer
            h = instance_norm3d(x, relu=True)
            h = conv3d(h, lp["conv1"], ks=(1, 1, 1))
            h = instance_norm3d(h, relu=True)
            h = conv3d(h, lp["conv2"], ks=(3, 3, 3), pad=(1, 1, 1))
            x = jnp.concatenate([x, h], axis=1)
        if i != n_blocks - 1:                 # _Transition
            x = instance_norm3d(x, relu=True)
            x = conv3d(x, blk["trans"], ks=(1, 1, 1))
            x = avgpool3d_2s2(x)
        else:                                 # norm5 + pool5 on the last block
            x = instance_norm3d(x, relu=False)
            x = maxpool3d_3s2p1(x)
        feat_list.append(jnp.mean(x, axis=2))
    return feat_list


def scse_forward(p, x):
    # channel squeeze-excitation (tiny (B,C) matmuls -> plain jnp per perf review)
    z = jnp.mean(x, axis=(2, 3))                                  # AdaptiveAvgPool2d(1)
    z = jnp.maximum(jnp.dot(z, p["cse_w1"]) + p["cse_b1"][None, :], 0.0)
    z = jnp.dot(z, p["cse_w2"]) + p["cse_b2"][None, :]
    cse = x * jax.nn.sigmoid(z)[:, :, None, None]
    # spatial squeeze-excitation (1x1 conv to a single channel)
    s = jnp.einsum("bchw,c->bhw", x, p["sse_w"]) + p["sse_b"]
    sse = x * jax.nn.sigmoid(s)[:, None, :, :]
    return cse + sse


def decoder_forward(modules, feat_list):
    feats = feat_list[::-1]
    result = None
    for i, feat in enumerate(feats):
        m = modules[i]
        if i == 0:
            # Conv2dReLU(k=1, bn=True): BN folded into the matmul epilogue, then LeakyReLU
            result = conv2d(feat, m["conv"], ks=(1, 1), pad=(0, 0), act="leaky")
        else:
            x = upsample2x(result)
            x = jnp.concatenate([x, feat], axis=1)
            x = scse_forward(m["att1"], x)                 # attention1 (scse)
            x = conv2d(x, m["conv1"], ks=(3, 3), pad=(1, 1), act="leaky")
            x = conv2d(x, m["conv2"], ks=(3, 3), pad=(1, 1), act="leaky")
            result = scse_forward(m["att2"], x)            # attention2 (scse)
    m = modules[-1]                                        # final block: no skip, no attn
    x = upsample2x(result)
    x = conv2d(x, m["conv1"], ks=(3, 3), pad=(1, 1), act="leaky")
    x = conv2d(x, m["conv2"], ks=(3, 3), pad=(1, 1), act="leaky")
    return x


@jax.jit
def ctp4d_forward(params, x):
    feat_list = encoder_forward(params["encoder"], x)
    return decoder_forward(params["decoder"], feat_list)


# ----------------------------------------------------------------------------
if __name__ == "__main__":
    # small but valid shapes: T must survive the temporal down-samplings, H=W % 32 == 0
    B, C, T, H, W = 1, 1, 13, 32, 32
    OUT_CH = 5

    kg = KeyGen(0)
    params = init_model(kg, input_size=(C, T, H, W), output_channel=OUT_CH)
    x = jax.random.normal(jax.random.PRNGKey(0), (B, C, T, H, W), dtype=jnp.float32)

    # sanity check of the fused Pallas matmul (bf16 inputs, f32 accumulation) vs XLA
    Ms, Ks, Ns = 640, 200, 72
    a = jax.random.normal(jax.random.PRNGKey(1), (Ms, Ks), jnp.float32)
    wt = jax.random.normal(jax.random.PRNGKey(2), (Ks, Ns), jnp.float32)
    Kp, Np = _round_up(Ks, LANE), _round_up(Ns, LANE)
    w_p = jnp.pad(wt, ((0, Kp - Ks), (0, Np - Ns))).astype(jnp.bfloat16)
    ones = jnp.ones((Ns,), jnp.float32)
    zeros = jnp.zeros((Ns,), jnp.float32)
    got = jax.jit(lambda aa: fused_matmul(aa, w_p, ones, zeros, "none"))(a)
    ref = jnp.dot(a.astype(jnp.bfloat16), wt.astype(jnp.bfloat16),
                  preferred_element_type=jnp.float32)
    assert jnp.allclose(got, ref, atol=2e-2, rtol=2e-2), float(jnp.max(jnp.abs(got - ref)))

    out = ctp4d_forward(params, x)
    out = jax.block_until_ready(out)
    assert out.shape == (B, OUT_CH, H, W), out.shape
    assert bool(jnp.all(jnp.isfinite(out)))
    print("KERNEL_OK")
</pallas_src>

<mosaic_0001>
module attributes {stable_mosaic.version = 11 : i64} {
  func.func @_fused_mm_kernel(%arg0: i32, %arg1: memref<512x256xbf16, #tpu.memory_space<vmem>>, %arg2: memref<256x128xbf16, #tpu.memory_space<vmem>>, %arg3: memref<1x128xf32, #tpu.memory_space<vmem>>, %arg4: memref<1x128xf32, #tpu.memory_space<vmem>>, %arg5: memref<512x128xf32, #tpu.memory_space<vmem>>) attributes {dimension_semantics = [#tpu.dimension_semantics<parallel>], iteration_bounds = array<i64: 2>, scalar_prefetch = 0 : i64, scratch_operands = 0 : i64, tpu.core_type = #tpu.core_type<tc>, window_params = [{transform_indices = @transform_0, window_bounds = array<i64: 512, 256>}, {pipeline_mode = #tpu.pipeline_mode<synchronous>, transform_indices = @transform_1, window_bounds = array<i64: 256, 128>}, {pipeline_mode = #tpu.pipeline_mode<synchronous>, transform_indices = @transform_2, window_bounds = array<i64: 1, 128>}, {pipeline_mode = #tpu.pipeline_mode<synchronous>, transform_indices = @transform_3, window_bounds = array<i64: 1, 128>}, {transform_indices = @transform_4, window_bounds = array<i64: 512, 128>}]} {
    %c0 = arith.constant 0 : index
    %c0_0 = arith.constant 0 : index
    %0 = vector.load %arg1[%c0, %c0_0] : memref<512x256xbf16, #tpu.memory_space<vmem>>, vector<512x256xbf16>
    %c0_1 = arith.constant 0 : index
    %c0_2 = arith.constant 0 : index
    %1 = vector.load %arg2[%c0_1, %c0_2] : memref<256x128xbf16, #tpu.memory_space<vmem>>, vector<256x128xbf16>
    %cst = arith.constant dense<0.000000e+00> : vector<512x128xf32>
    %2 = tpu.matmul %0, %1, %cst {dimension_numbers = #tpu.dot_dimension_numbers<[1], [0], [0], [1], [0, 0, 1, 1], [], []>} : vector<512x256xbf16>, vector<256x128xbf16>, vector<512x128xf32> -> vector<512x128xf32>
    %c0_3 = arith.constant 0 : index
    %c0_4 = arith.constant 0 : index
    %3 = vector.load %arg3[%c0_3, %c0_4] : memref<1x128xf32, #tpu.memory_space<vmem>>, vector<1x128xf32>
    %4 = vector.broadcast %3 : vector<1x128xf32> to vector<512x128xf32>
    %5 = arith.mulf %2, %4 : vector<512x128xf32>
    %c0_5 = arith.constant 0 : index
    %c0_6 = arith.constant 0 : index
    %6 = vector.load %arg4[%c0_5, %c0_6] : memref<1x128xf32, #tpu.memory_space<vmem>>, vector<1x128xf32>
    %7 = vector.broadcast %6 : vector<1x128xf32> to vector<512x128xf32>
    %8 = arith.addf %5, %7 : vector<512x128xf32>
    %c0_7 = arith.constant 0 : index
    %c0_8 = arith.constant 0 : index
    %9 = vector.load %arg5[%c0_7, %c0_8] : memref<512x128xf32, #tpu.memory_space<vmem>>, vector<512x128xf32>
    tpu.vector_store %arg5[%c0_7, %c0_8], %8 {strides = array<i32>} : memref<512x128xf32, #tpu.memory_space<vmem>>, vector<512x128xf32>,
    return
  }
  func.func @transform_0(%arg0: i32) -> (i32, i32) {
    %c0_i32 = arith.constant 0 : i32
    %c0_i32_0 = arith.constant 0 : i32
    return %arg0, %c0_i32 : i32, i32
  }
  func.func @transform_1(%arg0: i32) -> (i32, i32) {
    %c0_i32 = arith.constant 0 : i32
    %c0_i32_0 = arith.constant 0 : i32
    %c0_i32_1 = arith.constant 0 : i32
    return %c0_i32, %c0_i32_0 : i32, i32
  }
  func.func @transform_2(%arg0: i32) -> (i32, i32) {
    %c0_i32 = arith.constant 0 : i32
    %c0_i32_0 = arith.constant 0 : i32
    %c0_i32_1 = arith.constant 0 : i32
    return %c0_i32, %c0_i32_0 : i32, i32
  }
  func.func @transform_3(%arg0: i32) -> (i32, i32) {
    %c0_i32 = arith.constant 0 : i32
    %c0_i32_0 = arith.constant 0 : i32
    %c0_i32_1 = arith.constant 0 : i32
    return %c0_i32, %c0_i32_0 : i32, i32
  }
  func.func @transform_4(%arg0: i32) -> (i32, i32) {
    %c0_i32 = arith.constant 0 : i32
    %c0_i32_0 = arith.constant 0 : i32
    return %arg0, %c0_i32 : i32, i32
  }
}

</mosaic_0001>

<llo_original>
// kernel: _lambda_.1
$region0: #{_lambda_.1}
  #allocation0 [shape = 'u32[]', space=smem, size = 0x4, offset = 0x4, fixed_abs, tag = 'smem constant byte address 0x4 - core index']
  #allocation1 [shape = 'u32[144,128]{1,0:T(1,128)}', space=vmem, size = 0x12000, scoped, tag = 'internal scratch']
  %s0 = inlined_call_operand.vmem [shape: bf16[1024,256], index: 0, kind: input, shape index: {}]
  %s1 = inlined_call_operand.vmem [shape: bf16[256,128], index: 1, kind: input, shape index: {}]
  %s2 = inlined_call_operand.vmem [shape: f32[1,128], index: 2, kind: input, shape index: {}]
  %s3 = inlined_call_operand.vmem [shape: f32[1,128], index: 3, kind: input, shape index: {}]
  %s4 = inlined_call_operand.vmem [shape: f32[1024,128], index: 4, kind: output, shape index: {}]
  %s5 = sld [smem:[#allocation0]]
  $region49: #{_lambda_.1} parent=0
    _
  %s7 = ssub.s32 1, %s5
  %s8 = scalar_select 0, %s7, %s5
  loop: start=0, step=1, limit=4
  $region2: #{_lambda_.1} parent=0 // loop_pre_header
    _
  $region3: #{_lambda_.1} parent=0 // loop_header
    %s10 = sphi 0, %s14
    %p11 = scmp.ge.s32.totalorder %s10, 4
    %s20 = sphi 0, %s22
    %s23 = sphi 0, %s20
    %s24 = sphi 0, %s23
    %s40 = sphi 0, %s24
    %s44 = sphi 0, %s44
    %s46 = sphi 0, %s44
    %s47 = sphi 0, %s46
    %s61 = sphi 0, %s47
    %s65 = sphi 0, %s65
    %s67 = sphi 0, %s65
    %s68 = sphi 0, %s67
    %s82 = sphi 0, %s68
    %s86 = sphi 0, %s86
    %s88 = sphi 0, %s86
    %s89 = sphi 0, %s88
    %s103 = sphi 0, %s89
    %s109 = sphi 0, %s111
    %s112 = sphi 0, %s109
    %s113 = sphi 0, %s112
    %s129 = sphi 0, %s113
  $region4: #{_lambda_.1} parent=0 // loop_header_branch
    %13 = sbr.rel (%p11) target = $region8
  $region5: #{_lambda_.1} parent=0 // loop_body
    %s15 = ssub.s32 %s10, 1
    %s16 = ssub.s32 %s10, 2
    %s17 = sadd.s32 %s10, 1
    %s18 = ssub.s32 %s10, %s17
    %p19 = scmp.eq.s32.totalorder %s18, 0
    %s21 = sadd.s32 %s20, 1
    %s22 = scalar_select %p19, %s20, %s21
    %p25 = pneg %p19
    %p26 = scmp.eq.s32.totalorder %s10, 1
    %p27 = por %p25, %p26
    %p28 = scmp.ne.s32.totalorder %s20, %s23
    %p29 = scmp.eq.s32.totalorder %s10, 0
    %p30 = por %p28, %p29
    %p31 = scmp.ne.s32.totalorder %s20, %s23
    %p32 = scmp.eq.s32.totalorder %s15, 1
    %p33 = por %p31, %p32
    %p34 = scmp.ne.s32.totalorder %s23, %s24
    %p35 = scmp.eq.s32.totalorder %s15, 0
    %p36 = por %p34, %p35
    %p37 = scmp.ne.s32.totalorder %s23, %s24
    %p38 = scmp.eq.s32.totalorder %s16, 1
    %p39 = por %p37, %p38
    %p41 = scmp.ne.s32.totalorder %s24, %s40
    %p42 = scmp.eq.s32.totalorder %s16, 0
    %p43 = por %p41, %p42
    %s45 = sadd.s32 %s44, 1
    %p48 = scmp.eq.s32.totalorder %s10, 1
    %p49 = scmp.ne.s32.totalorder %s44, %s46
    %p50 = scmp.eq.s32.totalorder %s10, 0
    %p51 = por %p49, %p50
    %p52 = scmp.ne.s32.totalorder %s44, %s46
    %p53 = scmp.eq.s32.totalorder %s15, 1
    %p54 = por %p52, %p53
    %p55 = scmp.ne.s32.totalorder %s46, %s47
    %p56 = scmp.eq.s32.totalorder %s15, 0
    %p57 = por %p55, %p56
    %p58 = scmp.ne.s32.totalorder %s46, %s47
    %p59 = scmp.eq.s32.totalorder %s16, 1
    %p60 = por %p58, %p59
    %p62 = scmp.ne.s32.totalorder %s47, %s61
    %p63 = scmp.eq.s32.totalorder %s16, 0
    %p64 = por %p62, %p63
    %s66 = sadd.s32 %s65, 1
    %p69 = scmp.eq.s32.totalorder %s10, 1
    %p70 = scmp.ne.s32.totalorder %s65, %s67
    %p71 = scmp.eq.s32.totalorder %s10, 0
    %p72 = por %p70, %p71
    %p73 = scmp.ne.s32.totalorder %s65, %s67
    %p74 = scmp.eq.s32.totalorder %s15, 1
    %p75 = por %p73, %p74
    %p76 = scmp.ne.s32.totalorder %s67, %s68
    %p77 = scmp.eq.s32.totalorder %s15, 0
    %p78 = por %p76, %p77
    %p79 = scmp.ne.s32.totalorder %s67, %s68
    %p80 = scmp.eq.s32.totalorder %s16, 1
    %p81 = por %p79, %p80
    %p83 = scmp.ne.s32.totalorder %s68, %s82
    %p84 = scmp.eq.s32.totalorder %s16, 0
    %p85 = por %p83, %p84
    %s87 = sadd.s32 %s86, 1
    %p90 = scmp.eq.s32.totalorder %s10, 1
    %p91 = scmp.ne.s32.totalorder %s86, %s88
    %p92 = scmp.eq.s32.totalorder %s10, 0
    %p93 = por %p91, %p92
    %p94 = scmp.ne.s32.totalorder %s86, %s88
    %p95 = scmp.eq.s32.totalorder %s15, 1
    %p96 = por %p94, %p95
    %p97 = scmp.ne.s32.totalorder %s88, %s89
    %p98 = scmp.eq.s32.totalorder %s15, 0
    %p99 = por %p97, %p98
    %p100 = scmp.ne.s32.totalorder %s88, %s89
    %p101 = scmp.eq.s32.totalorder %s16, 1
    %p102 = por %p100, %p101
    %p104 = scmp.ne.s32.totalorder %s89, %s103
    %p105 = scmp.eq.s32.totalorder %s16, 0
    %p106 = por %p104, %p105
    %s107 = ssub.s32 %s10, %s17
    %p108 = scmp.eq.s32.totalorder %s107, 0
    %s110 = sadd.s32 %s109, 1
    %s111 = scalar_select %p108, %s109, %s110
    %p114 = pneg %p108
    %p115 = scmp.eq.s32.totalorder %s10, 1
    %p116 = por %p114, %p115
    %p117 = scmp.ne.s32.totalorder %s109, %s112
    %p118 = scmp.eq.s32.totalorder %s10, 0
    %p119 = por %p117, %p118
    %p120 = scmp.ne.s32.totalorder %s109, %s112
    %p121 = scmp.eq.s32.totalorder %s15, 1
    %p122 = por %p120, %p121
    %p123 = scmp.ne.s32.totalorder %s112, %s113
    %p124 = scmp.eq.s32.totalorder %s15, 0
    %p125 = por %p123, %p124
    %p126 = scmp.ne.s32.totalorder %s112, %s113
    %p127 = scmp.eq.s32.totalorder %s16, 1
    %p128 = por %p126, %p127
    %p130 = scmp.ne.s32.totalorder %s113, %s129
    %p131 = scmp.eq.s32.totalorder %s16, 0
    %p132 = por %p130, %p131
    %p133 = scmp.le.s32.totalorder 1, %s10
    %p134 = scmp.lt.s32.totalorder %s10, 3
    %p135 = pnand %p133, %p134
    %p136 = pneg %p135
    // Predicated region
    $region9: #{_lambda_.1} parent=5 // pred_check
      _
    $region10: #{_lambda_.1} parent=5 // pred_check_branch
      %138 = sbr.rel (%p135) target = $region12
    $region11: #{_lambda_.1} parent=5 // pred_region
      %s139 = ssub.s32 %s10, 1
      // Predicated region
      $region13: #{_lambda_.1} parent=11 // pred_check
        %p140 = pneg %p57
      $region14: #{_lambda_.1} parent=11 // pred_check_branch
        %142 = sbr.rel (%p140) target = $region16
      $region15: #{_lambda_.1} parent=11 // pred_region
        _
      $region16: #{_lambda_.1} parent=11 // pred_fallthru
        _
      // Predicated region
      $region17: #{_lambda_.1} parent=11 // pred_check
        %p143 = pneg %p78
      $region18: #{_lambda_.1} parent=11 // pred_check_branch
        %145 = sbr.rel (%p143) target = $region20
      $region19: #{_lambda_.1} parent=11 // pred_region
        _
      $region20: #{_lambda_.1} parent=11 // pred_fallthru
        _
      // Predicated region
      $region21: #{_lambda_.1} parent=11 // pred_check
        %p146 = pneg %p99
      $region22: #{_lambda_.1} parent=11 // pred_check_branch
        %148 = sbr.rel (%p146) target = $region24
      $region23: #{_lambda_.1} parent=11 // pred_region
        _
      $region24: #{_lambda_.1} parent=11 // pred_fallthru
        _
    $region12: #{_lambda_.1} parent=5 // pred_fallthru
      _
    %p149 = scmp.lt.s32.totalorder %s10, 2
    // Predicated region
    $region25: #{_lambda_.1} parent=5 // pred_check
      %p150 = pneg %p149
    $region26: #{_lambda_.1} parent=5 // pred_check_branch
      %152 = sbr.rel (%p150) target = $region28
    $region27: #{_lambda_.1} parent=5 // pred_region
      // Predicated region
      $region29: #{_lambda_.1} parent=27 // pred_check
        %p153 = pneg %p30
      $region30: #{_lambda_.1} parent=27 // pred_check_branch
        %155 = sbr.rel (%p153) target = $region32
      $region31: #{_lambda_.1} parent=27 // pred_region
        %s156 = smul.u32 64, %s10
        %p157 = scmp.lt.s32.totalorder %s156, 127
        %s158 = scalar_select %p157, %s156, 127
        %s159 = smul.addr %s158, 2
        %s160 = smul.addr %s159, 4
        %s161 = scalar_lea.vmem %s0, %s160
        %s162 = smul.u32 64, %s10
      $region32: #{_lambda_.1} parent=27 // pred_fallthru
        _
    $region28: #{_lambda_.1} parent=5 // pred_fallthru
      _
    %p163 = scmp.le.s32.totalorder 1, %s10
    %p164 = scmp.lt.s32.totalorder %s10, 3
    %p165 = pnand %p163, %p164
    %p166 = pneg %p165
    // Predicated region
    $region33: #{_lambda_.1} parent=5 // pred_check
      _
    $region34: #{_lambda_.1} parent=5 // pred_check_branch
      %168 = sbr.rel (%p165) target = $region36
    $region35: #{_lambda_.1} parent=5 // pred_region
      %s169 = ssub.s32 %s10, 1
      %s170 = smul.u32 64, %s15
      %p171 = scmp.lt.s32.totalorder %s170, 127
      %s172 = scalar_select %p171, %s170, 127
      %s173 = smul.addr %s172, 2
      %s174 = smul.addr %s173, 4
      %s175 = scalar_lea.vmem %s0, %s174
      %p176 = pneg %p36
      %p177 = pneg %p33
      %p178 = pneg %p57
      %p179 = pneg %p54
      %p180 = pneg %p78
      %p181 = pneg %p75
      %p182 = pneg %p99
      %p183 = pneg %p96
      %p184 = pneg %p125
      %p185 = pneg %p122
      %s186 = smul.u32 64, %s15
      %p187 = scmp.lt.s32.totalorder %s186, 127
      %s188 = scalar_select %p187, %s186, 127
      %s189 = smul.addr %s188, 8
      %s190 = scalar_lea.vmem %s4, %s189
      %s191 = smul.u32 64, %s15
      %p192 = scmp.lt.s32.totalorder %s191, 127
      %s193 = scalar_select %p192, %s191, 127
      %s194 = smul.addr %s193, 2
      %s195 = smul.addr %s194, 4
      %s196 = scalar_lea.vmem %s0, %s195
      %s197 = smul.u32 64, %s15
      %s198 = smul.u32 64, %s15
      %p199 = scmp.lt.s32.totalorder %s198, 127
      %s200 = scalar_select %p199, %s198, 127
      %s201 = smul.addr %s200, 8
      %s202 = scalar_lea.vmem %s4, %s201
      %s203 = smul.u32 64, %s15
      %v205 = vld [vmem:[%s196] sm:$0xff]
      %v206 = vld [vmem:[%s196 + $0x8] sm:$0xff]
      %v207 = vld [vmem:[%s196 + $0x10] sm:$0xff]
      %v208 = vld [vmem:[%s196 + $0x18] sm:$0xff]
      %v209 = vld [vmem:[%s196 + $0x20] sm:$0xff]
      %v210 = vld [vmem:[%s196 + $0x28] sm:$0xff]
      %v211 = vld [vmem:[%s196 + $0x30] sm:$0xff]
      %v212 = vld [vmem:[%s196 + $0x38] sm:$0xff]
      %v213 = vld [vmem:[%s196 + $0x40] sm:$0xff]
      %v214 = vld [vmem:[%s196 + $0x48] sm:$0xff]
      %v215 = vld [vmem:[%s196 + $0x50] sm:$0xff]
      %v216 = vld [vmem:[%s196 + $0x58] sm:$0xff]
      %v217 = vld [vmem:[%s196 + $0x60] sm:$0xff]
      %v218 = vld [vmem:[%s196 + $0x68] sm:$0xff]
      %v219 = vld [vmem:[%s196 + $0x70] sm:$0xff]
      %v220 = vld [vmem:[%s196 + $0x78] sm:$0xff]
      %v221 = vld [vmem:[%s196 + $0x80] sm:$0xff]
      %v222 = vld [vmem:[%s196 + $0x88] sm:$0xff]
      %v223 = vld [vmem:[%s196 + $0x90] sm:$0xff]
      %v224 = vld [vmem:[%s196 + $0x98] sm:$0xff]
      %v225 = vld [vmem:[%s196 + $0xa0] sm:$0xff]
      %v226 = vld [vmem:[%s196 + $0xa8] sm:$0xff]
      %v227 = vld [vmem:[%s196 + $0xb0] sm:$0xff]
      %v228 = vld [vmem:[%s196 + $0xb8] sm:$0xff]
      %v229 = vld [vmem:[%s196 + $0xc0] sm:$0xff]
      %v230 = vld [vmem:[%s196 + $0xc8] sm:$0xff]
      %v231 = vld [vmem:[%s196 + $0xd0] sm:$0xff]
      %v232 = vld [vmem:[%s196 + $0xd8] sm:$0xff]
      %v233 = vld [vmem:[%s196 + $0xe0] sm:$0xff]
      %v234 = vld [vmem:[%s196 + $0xe8] sm:$0xff]
      %v235 = vld [vmem:[%s196 + $0xf0] sm:$0xff]
      %v236 = vld [vmem:[%s196 + $0xf8] sm:$0xff]
      %v237 = vld [vmem:[%s196 + $0x100] sm:$0xff]
      %v238 = vld [vmem:[%s196 + $0x108] sm:$0xff]
      %v239 = vld [vmem:[%s196 + $0x110] sm:$0xff]
      %v240 = vld [vmem:[%s196 + $0x118] sm:$0xff]
      %v241 = vld [vmem:[%s196 + $0x120] sm:$0xff]
      %v242 = vld [vmem:[%s196 + $0x128] sm:$0xff]
      %v243 = vld [vmem:[%s196 + $0x130] sm:$0xff]
      %v244 = vld [vmem:[%s196 + $0x138] sm:$0xff]
      %v245 = vld [vmem:[%s196 + $0x140] sm:$0xff]
      %v246 = vld [vmem:[%s196 + $0x148] sm:$0xff]
      %v247 = vld [vmem:[%s196 + $0x150] sm:$0xff]
      %v248 = vld [vmem:[%s196 + $0x158] sm:$0xff]
      %v249 = vld [vmem:[%s196 + $0x160] sm:$0xff]
      %v250 = vld [vmem:[%s196 + $0x168] sm:$0xff]
      %v251 = vld [vmem:[%s196 + $0x170] sm:$0xff]
      %v252 = vld [vmem:[%s196 + $0x178] sm:$0xff]
      %v253 = vld [vmem:[%s196 + $0x180] sm:$0xff]
      %v254 = vld [vmem:[%s196 + $0x188] sm:$0xff]
      %v255 = vld [vmem:[%s196 + $0x190] sm:$0xff]
      %v256 = vld [vmem:[%s196 + $0x198] sm:$0xff]
      %v257 = vld [vmem:[%s196 + $0x1a0] sm:$0xff]
      %v258 = vld [vmem:[%s196 + $0x1a8] sm:$0xff]
      %v259 = vld [vmem:[%s196 + $0x1b0] sm:$0xff]
      %v260 = vld [vmem:[%s196 + $0x1b8] sm:$0xff]
      %v261 = vld [vmem:[%s196 + $0x1c0] sm:$0xff]
      %v262 = vld [vmem:[%s196 + $0x1c8] sm:$0xff]
      %v263 = vld [vmem:[%s196 + $0x1d0] sm:$0xff]
      %v264 = vld [vmem:[%s196 + $0x1d8] sm:$0xff]
      %v265 = vld [vmem:[%s196 + $0x1e0] sm:$0xff]
      %v266 = vld [vmem:[%s196 + $0x1e8] sm:$0xff]
      %v267 = vld [vmem:[%s196 + $0x1f0] sm:$0xff]
      %v268 = vld [vmem:[%s196 + $0x1f8] sm:$0xff]
      %v269 = vld [vmem:[%s1] sm:$0xf]
      %v270 = vld [vmem:[%s1 + $0x4] sm:$0xf]
      %v271 = vld [vmem:[%s1 + $0x8] sm:$0xf]
      %v272 = vld [vmem:[%s1 + $0xc] sm:$0xf]
      %v273 = vld [vmem:[%s1 + $0x10] sm:$0xf]
      %v274 = vld [vmem:[%s1 + $0x14] sm:$0xf]
      %v275 = vld [vmem:[%s1 + $0x18] sm:$0xf]
      %v276 = vld [vmem:[%s1 + $0x1c] sm:$0xf]
      %v277 = vld [vmem:[%s1 + $0x20] sm:$0xf]
      %v278 = vld [vmem:[%s1 + $0x24] sm:$0xf]
      %v279 = vld [vmem:[%s1 + $0x28] sm:$0xf]
      %v280 = vld [vmem:[%s1 + $0x2c] sm:$0xf]
      %v281 = vld [vmem:[%s1 + $0x30] sm:$0xf]
      %v282 = vld [vmem:[%s1 + $0x34] sm:$0xf]
      %v283 = vld [vmem:[%s1 + $0x38] sm:$0xf]
      %v284 = vld [vmem:[%s1 + $0x3c] sm:$0xf]
      %v285 = vld [vmem:[%s1 + $0x40] sm:$0xf]
      %v286 = vld [vmem:[%s1 + $0x44] sm:$0xf]
      %v287 = vld [vmem:[%s1 + $0x48] sm:$0xf]
      %v288 = vld [vmem:[%s1 + $0x4c] sm:$0xf]
      %v289 = vld [vmem:[%s1 + $0x50] sm:$0xf]
      %v290 = vld [vmem:[%s1 + $0x54] sm:$0xf]
      %v291 = vld [vmem:[%s1 + $0x58] sm:$0xf]
      %v292 = vld [vmem:[%s1 + $0x5c] sm:$0xf]
      %v293 = vld [vmem:[%s1 + $0x60] sm:$0xf]
      %v294 = vld [vmem:[%s1 + $0x64] sm:$0xf]
      %v295 = vld [vmem:[%s1 + $0x68] sm:$0xf]
      %v296 = vld [vmem:[%s1 + $0x6c] sm:$0xf]
      %v297 = vld [vmem:[%s1 + $0x70] sm:$0xf]
      %v298 = vld [vmem:[%s1 + $0x74] sm:$0xf]
      %v299 = vld [vmem:[%s1 + $0x78] sm:$0xf]
      %v300 = vld [vmem:[%s1 + $0x7c] sm:$0xf]
      %v365 = vunpack.c.l.b16 %v205
      %v366 = vunpack.c.h.b16 %v205
      %v367 = vunpack.c.l.b16 %v206
      %v368 = vunpack.c.h.b16 %v206
      %v369 = vunpack.c.l.b16 %v207
      %v370 = vunpack.c.h.b16 %v207
      %v371 = vunpack.c.l.b16 %v208
      %v372 = vunpack.c.h.b16 %v208
      %v373 = vunpack.c.l.b16 %v209
      %v374 = vunpack.c.h.b16 %v209
      %v375 = vunpack.c.l.b16 %v210
      %v376 = vunpack.c.h.b16 %v210
      %v377 = vunpack.c.l.b16 %v211
      %v378 = vunpack.c.h.b16 %v211
      %v379 = vunpack.c.l.b16 %v212
      %v380 = vunpack.c.h.b16 %v212
      %v381 = vunpack.c.l.b16 %v213
      %v382 = vunpack.c.h.b16 %v213
      %v383 = vunpack.c.l.b16 %v214
      %v384 = vunpack.c.h.b16 %v214
      %v385 = vunpack.c.l.b16 %v215
      %v386 = vunpack.c.h.b16 %v215
      %v387 = vunpack.c.l.b16 %v216
      %v388 = vunpack.c.h.b16 %v216
      %v389 = vunpack.c.l.b16 %v217
      %v390 = vunpack.c.h.b16 %v217
      %v391 = vunpack.c.l.b16 %v218
      %v392 = vunpack.c.h.b16 %v218
      %v393 = vunpack.c.l.b16 %v219
      %v394 = vunpack.c.h.b16 %v219
      %v395 = vunpack.c.l.b16 %v220
      %v396 = vunpack.c.h.b16 %v220
      %v397 = vunpack.c.l.b16 %v221
      %v398 = vunpack.c.h.b16 %v221
      %v399 = vunpack.c.l.b16 %v222
      %v400 = vunpack.c.h.b16 %v222
      %v401 = vunpack.c.l.b16 %v223
      %v402 = vunpack.c.h.b16 %v223
      %v403 = vunpack.c.l.b16 %v224
      %v404 = vunpack.c.h.b16 %v224
      %v405 = vunpack.c.l.b16 %v225
      %v406 = vunpack.c.h.b16 %v225
      %v407 = vunpack.c.l.b16 %v226
      %v408 = vunpack.c.h.b16 %v226
      %v409 = vunpack.c.l.b16 %v227
      %v410 = vunpack.c.h.b16 %v227
      %v411 = vunpack.c.l.b16 %v228
      %v412 = vunpack.c.h.b16 %v228
      %v413 = vunpack.c.l.b16 %v229
      %v414 = vunpack.c.h.b16 %v229
      %v415 = vunpack.c.l.b16 %v230
      %v416 = vunpack.c.h.b16 %v230
      %v417 = vunpack.c.l.b16 %v231
      %v418 = vunpack.c.h.b16 %v231
      %v419 = vunpack.c.l.b16 %v232
      %v420 = vunpack.c.h.b16 %v232
      %v421 = vunpack.c.l.b16 %v233
      %v422 = vunpack.c.h.b16 %v233
      %v423 = vunpack.c.l.b16 %v234
      %v424 = vunpack.c.h.b16 %v234
      %v425 = vunpack.c.l.b16 %v235
      %v426 = vunpack.c.h.b16 %v235
      %v427 = vunpack.c.l.b16 %v236
      %v428 = vunpack.c.h.b16 %v236
      %v429 = vunpack.c.l.b16 %v237
      %v430 = vunpack.c.h.b16 %v237
      %v431 = vunpack.c.l.b16 %v238
      %v432 = vunpack.c.h.b16 %v238
      %v433 = vunpack.c.l.b16 %v239
      %v434 = vunpack.c.h.b16 %v239
      %v435 = vunpack.c.l.b16 %v240
      %v436 = vunpack.c.h.b16 %v240
      %v437 = vunpack.c.l.b16 %v241
      %v438 = vunpack.c.h.b16 %v241
      %v439 = vunpack.c.l.b16 %v242
      %v440 = vunpack.c.h.b16 %v242
      %v441 = vunpack.c.l.b16 %v243
      %v442 = vunpack.c.h.b16 %v243
      %v443 = vunpack.c.l.b16 %v244
      %v444 = vunpack.c.h.b16 %v244
      %v445 = vunpack.c.l.b16 %v245
      %v446 = vunpack.c.h.b16 %v245
      %v447 = vunpack.c.l.b16 %v246
      %v448 = vunpack.c.h.b16 %v246
      %v449 = vunpack.c.l.b16 %v247
      %v450 = vunpack.c.h.b16 %v247
      %v451 = vunpack.c.l.b16 %v248
      %v452 = vunpack.c.h.b16 %v248
      %v453 = vunpack.c.l.b16 %v249
      %v454 = vunpack.c.h.b16 %v249
      %v455 = vunpack.c.l.b16 %v250
      %v456 = vunpack.c.h.b16 %v250
      %v457 = vunpack.c.l.b16 %v251
      %v458 = vunpack.c.h.b16 %v251
      %v459 = vunpack.c.l.b16 %v252
      %v460 = vunpack.c.h.b16 %v252
      %v461 = vunpack.c.l.b16 %v253
      %v462 = vunpack.c.h.b16 %v253
      %v463 = vunpack.c.l.b16 %v254
      %v464 = vunpack.c.h.b16 %v254
      %v465 = vunpack.c.l.b16 %v255
      %v466 = vunpack.c.h.b16 %v255
      %v467 = vunpack.c.l.b16 %v256
      %v468 = vunpack.c.h.b16 %v256
      %v469 = vunpack.c.l.b16 %v257
      %v470 = vunpack.c.h.b16 %v257
      %v471 = vunpack.c.l.b16 %v258
      %v472 = vunpack.c.h.b16 %v258
      %v473 = vunpack.c.l.b16 %v259
      %v474 = vunpack.c.h.b16 %v259
      %v475 = vunpack.c.l.b16 %v260
      %v476 = vunpack.c.h.b16 %v260
      %v477 = vunpack.c.l.b16 %v261
      %v478 = vunpack.c.h.b16 %v261
      %v479 = vunpack.c.l.b16 %v262
      %v480 = vunpack.c.h.b16 %v262
      %v481 = vunpack.c.l.b16 %v263
      %v482 = vunpack.c.h.b16 %v263
      %v483 = vunpack.c.l.b16 %v264
      %v484 = vunpack.c.h.b16 %v264
      %v485 = vunpack.c.l.b16 %v265
      %v486 = vunpack.c.h.b16 %v265
      %v487 = vunpack.c.l.b16 %v266
      %v488 = vunpack.c.h.b16 %v266
      %v489 = vunpack.c.l.b16 %v267
      %v490 = vunpack.c.h.b16 %v267
      %v491 = vunpack.c.l.b16 %v268
      %v492 = vunpack.c.h.b16 %v268
      %v493 = vpack.c.b16 %v367, %v365
      %v494 = vpack.c.b16 %v368, %v366
      %v495 = vpack.c.b16 %v371, %v369
      %v496 = vpack.c.b16 %v372, %v370
      %v497 = vpack.c.b16 %v375, %v373
      %v498 = vpack.c.b16 %v376, %v374
      %v499 = vpack.c.b16 %v379, %v377
      %v500 = vpack.c.b16 %v380, %v378
      %v501 = vpack.c.b16 %v383, %v381
      %v502 = vpack.c.b16 %v384, %v382
      %v503 = vpack.c.b16 %v387, %v385
      %v504 = vpack.c.b16 %v388, %v386
      %v505 = vpack.c.b16 %v391, %v389
      %v506 = vpack.c.b16 %v392, %v390
      %v507 = vpack.c.b16 %v395, %v393
      %v508 = vpack.c.b16 %v396, %v394
      %v509 = vpack.c.b16 %v399, %v397
      %v510 = vpack.c.b16 %v400, %v398
      %v511 = vpack.c.b16 %v403, %v401
      %v512 = vpack.c.b16 %v404, %v402
      %v513 = vpack.c.b16 %v407, %v405
      %v514 = vpack.c.b16 %v408, %v406
      %v515 = vpack.c.b16 %v411, %v409
      %v516 = vpack.c.b16 %v412, %v410
      %v517 = vpack.c.b16 %v415, %v413
      %v518 = vpack.c.b16 %v416, %v414
      %v519 = vpack.c.b16 %v419, %v417
      %v520 = vpack.c.b16 %v420, %v418
      %v521 = vpack.c.b16 %v423, %v421
      %v522 = vpack.c.b16 %v424, %v422
      %v523 = vpack.c.b16 %v427, %v425
      %v524 = vpack.c.b16 %v428, %v426
      %v525 = vpack.c.b16 %v431, %v429
      %v526 = vpack.c.b16 %v432, %v430
      %v527 = vpack.c.b16 %v435, %v433
      %v528 = vpack.c.b16 %v436, %v434
      %v529 = vpack.c.b16 %v439, %v437
      %v530 = vpack.c.b16 %v440, %v438
      %v531 = vpack.c.b16 %v443, %v441
      %v532 = vpack.c.b16 %v444, %v442
      %v533 = vpack.c.b16 %v447, %v445
      %v534 = vpack.c.b16 %v448, %v446
      %v535 = vpack.c.b16 %v451, %v449
      %v536 = vpack.c.b16 %v452, %v450
      %v537 = vpack.c.b16 %v455, %v453
      %v538 = vpack.c.b16 %v456, %v454
      %v539 = vpack.c.b16 %v459, %v457
      %v540 = vpack.c.b16 %v460, %v458
      %v541 = vpack.c.b16 %v463, %v461
      %v542 = vpack.c.b16 %v464, %v462
      %v543 = vpack.c.b16 %v467, %v465
      %v544 = vpack.c.b16 %v468, %v466
      %v545 = vpack.c.b16 %v471, %v469
      %v546 = vpack.c.b16 %v472, %v470
      %v547 = vpack.c.b16 %v475, %v473
      %v548 = vpack.c.b16 %v476, %v474
      %v549 = vpack.c.b16 %v479, %v477
      %v550 = vpack.c.b16 %v480, %v478
      %v551 = vpack.c.b16 %v483, %v481
      %v552 = vpack.c.b16 %v484, %v482
      %v553 = vpack.c.b16 %v487, %v485
      %v554 = vpack.c.b16 %v488, %v486
      %v555 = vpack.c.b16 %v491, %v489
      %v556 = vpack.c.b16 %v492, %v490
      %v653 = vunpack.c.l.b16 %v269
      %v654 = vunpack.c.l.b16 %v270
      %v655 = vunpack.c.l.b16 %v271
      %v656 = vunpack.c.l.b16 %v272
      %v657 = vunpack.c.l.b16 %v273
      %v658 = vunpack.c.l.b16 %v274
      %v659 = vunpack.c.l.b16 %v275
      %v660 = vunpack.c.l.b16 %v276
      %v661 = vunpack.c.l.b16 %v277
      %v662 = vunpack.c.l.b16 %v278
      %v663 = vunpack.c.l.b16 %v279
      %v664 = vunpack.c.l.b16 %v280
      %v665 = vunpack.c.l.b16 %v281
      %v666 = vunpack.c.l.b16 %v282
      %v667 = vunpack.c.l.b16 %v283
      %v668 = vunpack.c.l.b16 %v284
      %v669 = vunpack.c.l.b16 %v285
      %v670 = vunpack.c.l.b16 %v286
      %v671 = vunpack.c.l.b16 %v287
      %v672 = vunpack.c.l.b16 %v288
      %v673 = vunpack.c.l.b16 %v289
      %v674 = vunpack.c.l.b16 %v290
      %v675 = vunpack.c.l.b16 %v291
      %v676 = vunpack.c.l.b16 %v292
      %v677 = vunpack.c.l.b16 %v293
      %v678 = vunpack.c.l.b16 %v294
      %v679 = vunpack.c.l.b16 %v295
      %v680 = vunpack.c.l.b16 %v296
      %v681 = vunpack.c.l.b16 %v297
      %v682 = vunpack.c.l.b16 %v298
      %v683 = vunpack.c.l.b16 %v299
      %v684 = vunpack.c.l.b16 %v300
      %v685 = vpack.c.b16 %v654, %v653
      %v686 = vpack.c.b16 %v656, %v655
      %v687 = vpack.c.b16 %v658, %v657
      %v688 = vpack.c.b16 %v660, %v659
      %v689 = vpack.c.b16 %v662, %v661
      %v690 = vpack.c.b16 %v664, %v663
      %v691 = vpack.c.b16 %v666, %v665
      %v692 = vpack.c.b16 %v668, %v667
      %v693 = vpack.c.b16 %v670, %v669
      %v694 = vpack.c.b16 %v672, %v671
      %v695 = vpack.c.b16 %v674, %v673
      %v696 = vpack.c.b16 %v676, %v675
      %v697 = vpack.c.b16 %v678, %v677
      %v698 = vpack.c.b16 %v680, %v679
      %v699 = vpack.c.b16 %v682, %v681
      %v700 = vpack.c.b16 %v684, %v683
      %717 = vmatprep.subr.bf16.mxu0 0
      %718 = vmatpush1.bf16.msra.mxu0 %v692
      %719 = vmatprep.subr.bf16.mxu0 0
      %720 = vmatpush1.bf16.msra.mxu0 %v691
      %721 = vmatprep.subr.bf16.mxu0 0
      %722 = vmatpush1.bf16.msra.mxu0 %v690
      %723 = vmatprep.subr.bf16.mxu0 0
      %724 = vmatpush1.bf16.msra.mxu0 %v689
      %725 = vmatprep.subr.bf16.mxu0 0
      %726 = vmatpush1.bf16.msra.mxu0 %v688
      %727 = vmatprep.subr.bf16.mxu0 0
      %728 = vmatpush1.bf16.msra.mxu0 %v687
      %729 = vmatprep.subr.bf16.mxu0 0
      %730 = vmatpush1.bf16.msra.mxu0 %v686
      %731 = vmatprep.subr.bf16.mxu0 0
      %732 = vmatpush1.bf16.msra.mxu0 %v685
      %733 = vmatprep.subr.bf16.mxu0 0
      %734 = vmatpush2.bf16.msra.mxu0 %v700
      %735 = vmatprep.subr.bf16.mxu0 0
      %736 = vmatpush2.bf16.msra.mxu0 %v699
      %737 = vmatprep.subr.bf16.mxu0 0
      %738 = vmatpush2.bf16.msra.mxu0 %v698
      %739 = vmatprep.subr.bf16.mxu0 0
      %740 = vmatpush2.bf16.msra.mxu0 %v697
      %741 = vmatprep.subr.bf16.mxu0 0
      %742 = vmatpush2.bf16.msra.mxu0 %v696
      %743 = vmatprep.subr.bf16.mxu0 0
      %744 = vmatpush2.bf16.msra.mxu0 %v695
      %745 = vmatprep.subr.bf16.mxu0 0
      %746 = vmatpush2.bf16.msra.mxu0 %v694
      %747 = vmatprep.subr.bf16.mxu0 0
      %748 = vmatpush2.bf16.msra.mxu0 %v693
      %749 = vmatprep.mubr.bf16.mxu0 %v494
      %750 = vmatmul.mubr.bf16.gmra.mxu0 %v493
      %v751 = vpop.f32.mrf.mxu0
      %v752 = vadd.f32 0.0, %v751
      %v753 = vpop.f32.mrf.mxu0
      %v754 = vpop.f32.mrf.mxu0
      %v755 = vadd.f32 0.0, %v754
      %v756 = vpop.f32.mrf.mxu0
      %757 = vmatprep.mubr.bf16.mxu0 %v496
      %758 = vmatmul.mubr.bf16.gmra.mxu0 %v495
      %v759 = vpop.f32.mrf.mxu0
      %v760 = vadd.f32 0.0, %v759
      %v761 = vpop.f32.mrf.mxu0
      %v762 = vpop.f32.mrf.mxu0
      %v763 = vadd.f32 0.0, %v762
      %v764 = vpop.f32.mrf.mxu0
      %765 = vmatprep.mubr.bf16.mxu0 %v498
      %766 = vmatmul.mubr.bf16.gmra.mxu0 %v497
      %v767 = vpop.f32.mrf.mxu0
      %v768 = vadd.f32 0.0, %v767
      %v769 = vpop.f32.mrf.mxu0
      %v770 = vpop.f32.mrf.mxu0
      %v771 = vadd.f32 0.0, %v770
      %v772 = vpop.f32.mrf.mxu0
      %773 = vmatprep.mubr.bf16.mxu0 %v500
      %774 = vmatmul.mubr.bf16.gmra.mxu0 %v499
      %v775 = vpop.f32.mrf.mxu0
      %v776 = vadd.f32 0.0, %v775
      %v777 = vpop.f32.mrf.mxu0
      %v778 = vpop.f32.mrf.mxu0
      %v779 = vadd.f32 0.0, %v778
      %v780 = vpop.f32.mrf.mxu0
      %781 = vmatprep.mubr.bf16.mxu0 %v502
      %782 = vmatmul.mubr.bf16.gmra.mxu0 %v501
      %v783 = vpop.f32.mrf.mxu0
      %v784 = vadd.f32 0.0, %v783
      %v785 = vpop.f32.mrf.mxu0
      %v786 = vpop.f32.mrf.mxu0
      %v787 = vadd.f32 0.0, %v786
      %v788 = vpop.f32.mrf.mxu0
      %789 = vmatprep.mubr.bf16.mxu0 %v504
      %790 = vmatmul.mubr.bf16.gmra.mxu0 %v503
      %v791 = vpop.f32.mrf.mxu0
      %v792 = vadd.f32 0.0, %v791
      %v793 = vpop.f32.mrf.mxu0
      %v794 = vpop.f32.mrf.mxu0
      %v795 = vadd.f32 0.0, %v794
      %v796 = vpop.f32.mrf.mxu0
      %797 = vmatprep.mubr.bf16.mxu0 %v506
      %798 = vmatmul.mubr.bf16.gmra.mxu0 %v505
      %v799 = vpop.f32.mrf.mxu0
      %v800 = vadd.f32 0.0, %v799
      %v801 = vpop.f32.mrf.mxu0
      %v802 = vpop.f32.mrf.mxu0
      %v803 = vadd.f32 0.0, %v802
      %v804 = vpop.f32.mrf.mxu0
      %805 = vmatprep.mubr.bf16.mxu0 %v508
      %806 = vmatmul.mubr.bf16.gmra.mxu0 %v507
      %v807 = vpop.f32.mrf.mxu0
      %v808 = vadd.f32 0.0, %v807
      %v809 = vpop.f32.mrf.mxu0
      %v810 = vpop.f32.mrf.mxu0
      %v811 = vadd.f32 0.0, %v810
      %v812 = vpop.f32.mrf.mxu0
      %813 = vmatprep.mubr.bf16.mxu0 %v510
      %814 = vmatmul.mubr.bf16.gmra.mxu0 %v509
      %v815 = vpop.f32.mrf.mxu0
      %v816 = vadd.f32 0.0, %v815
      %v817 = vpop.f32.mrf.mxu0
      %v818 = vpop.f32.mrf.mxu0
      %v819 = vadd.f32 0.0, %v818
      %v820 = vpop.f32.mrf.mxu0
      %821 = vmatprep.mubr.bf16.mxu0 %v512
      %822 = vmatmul.mubr.bf16.gmra.mxu0 %v511
      %v823 = vpop.f32.mrf.mxu0
      %v824 = vadd.f32 0.0, %v823
      %v825 = vpop.f32.mrf.mxu0
      %v826 = vpop.f32.mrf.mxu0
      %v827 = vadd.f32 0.0, %v826
      %v828 = vpop.f32.mrf.mxu0
      %829 = vmatprep.mubr.bf16.mxu0 %v514
      %830 = vmatmul.mubr.bf16.gmra.mxu0 %v513
      %v831 = vpop.f32.mrf.mxu0
      %v832 = vadd.f32 0.0, %v831
      %v833 = vpop.f32.mrf.mxu0
      %v834 = vpop.f32.mrf.mxu0
      %v835 = vadd.f32 0.0, %v834
      %v836 = vpop.f32.mrf.mxu0
      %837 = vmatprep.mubr.bf16.mxu0 %v516
      %838 = vmatmul.mubr.bf16.gmra.mxu0 %v515
      %v839 = vpop.f32.mrf.mxu0
      %v840 = vadd.f32 0.0, %v839
      %v841 = vpop.f32.mrf.mxu0
      %v842 = vpop.f32.mrf.mxu0
      %v843 = vadd.f32 0.0, %v842
      %v844 = vpop.f32.mrf.mxu0
      %845 = vmatprep.mubr.bf16.mxu0 %v518
      %846 = vmatmul.mubr.bf16.gmra.mxu0 %v517
      %v847 = vpop.f32.mrf.mxu0
      %v848 = vadd.f32 0.0, %v847
      %v849 = vpop.f32.mrf.mxu0
      %v850 = vpop.f32.mrf.mxu0
      %v851 = vadd.f32 0.0, %v850
      %v852 = vpop.f32.mrf.mxu0
      %853 = vmatprep.mubr.bf16.mxu0 %v520
      %854 = vmatmul.mubr.bf16.gmra.mxu0 %v519
      %v855 = vpop.f32.mrf.mxu0
      %v856 = vadd.f32 0.0, %v855
      %v857 = vpop.f32.mrf.mxu0
      %v858 = vpop.f32.mrf.mxu0
      %v859 = vadd.f32 0.0, %v858
      %v860 = vpop.f32.mrf.mxu0
      %861 = vmatprep.mubr.bf16.mxu0 %v522
      %862 = vmatmul.mubr.bf16.gmra.mxu0 %v521
      %v863 = vpop.f32.mrf.mxu0
      %v864 = vadd.f32 0.0, %v863
      %v865 = vpop.f32.mrf.mxu0
      %v866 = vpop.f32.mrf.mxu0
      %v867 = vadd.f32 0.0, %v866
      %v868 = vpop.f32.mrf.mxu0
      %869 = vmatprep.mubr.bf16.mxu0 %v524
      %870 = vmatmul.mubr.bf16.gmra.mxu0 %v523
      %v871 = vpop.f32.mrf.mxu0
      %v872 = vadd.f32 0.0, %v871
      %v873 = vpop.f32.mrf.mxu0
      %v874 = vpop.f32.mrf.mxu0
      %v875 = vadd.f32 0.0, %v874
      %v876 = vpop.f32.mrf.mxu0
      %877 = vmatprep.mubr.bf16.mxu0 %v526
      %878 = vmatmul.mubr.bf16.gmra.mxu0 %v525
      %v879 = vpop.f32.mrf.mxu0
      %v880 = vadd.f32 0.0, %v879
      %v881 = vpop.f32.mrf.mxu0
      %v882 = vpop.f32.mrf.mxu0
      %v883 = vadd.f32 0.0, %v882
      %v884 = vpop.f32.mrf.mxu0
      %885 = vmatprep.mubr.bf16.mxu0 %v528
      %886 = vmatmul.mubr.bf16.gmra.mxu0 %v527
      %v887 = vpop.f32.mrf.mxu0
      %v888 = vadd.f32 0.0, %v887
      %v889 = vpop.f32.mrf.mxu0
      %v890 = vpop.f32.mrf.mxu0
      %v891 = vadd.f32 0.0, %v890
      %v892 = vpop.f32.mrf.mxu0
      %893 = vmatprep.mubr.bf16.mxu0 %v530
      %894 = vmatmul.mubr.bf16.gmra.mxu0 %v529
      %v895 = vpop.f32.mrf.mxu0
      %v896 = vadd.f32 0.0, %v895
      %v897 = vpop.f32.mrf.mxu0
      %v898 = vpop.f32.mrf.mxu0
      %v899 = vadd.f32 0.0, %v898
      %v900 = vpop.f32.mrf.mxu0
      %901 = vmatprep.mubr.bf16.mxu0 %v532
      %902 = vmatmul.mubr.bf16.gmra.mxu0 %v531
      %v903 = vpop.f32.mrf.mxu0
      %v904 = vadd.f32 0.0, %v903
      %v905 = vpop.f32.mrf.mxu0
      %v906 = vpop.f32.mrf.mxu0
      %v907 = vadd.f32 0.0, %v906
      %v908 = vpop.f32.mrf.mxu0
      %909 = vmatprep.mubr.bf16.mxu0 %v534
      %910 = vmatmul.mubr.bf16.gmra.mxu0 %v533
      %v911 = vpop.f32.mrf.mxu0
      %v912 = vadd.f32 0.0, %v911
      %v913 = vpop.f32.mrf.mxu0
      %v914 = vpop.f32.mrf.mxu0
      %v915 = vadd.f32 0.0, %v914
      %v916 = vpop.f32.mrf.mxu0
      %917 = vmatprep.mubr.bf16.mxu0 %v536
      %918 = vmatmul.mubr.bf16.gmra.mxu0 %v535
      %v919 = vpop.f32.mrf.mxu0
      %v920 = vadd.f32 0.0, %v919
      %v921 = vpop.f32.mrf.mxu0
      %v922 = vpop.f32.mrf.mxu0
      %v923 = vadd.f32 0.0, %v922
      %v924 = vpop.f32.mrf.mxu0
      %925 = vmatprep.mubr.bf16.mxu0 %v538
      %926 = vmatmul.mubr.bf16.gmra.mxu0 %v537
      %v927 = vpop.f32.mrf.mxu0
      %v928 = vadd.f32 0.0, %v927
      %v929 = vpop.f32.mrf.mxu0
      %v930 = vpop.f32.mrf.mxu0
      %v931 = vadd.f32 0.0, %v930
      %v932 = vpop.f32.mrf.mxu0
      %933 = vmatprep.mubr.bf16.mxu0 %v540
      %934 = vmatmul.mubr.bf16.gmra.mxu0 %v539
      %v935 = vpop.f32.mrf.mxu0
      %v936 = vadd.f32 0.0, %v935
      %v937 = vpop.f32.mrf.mxu0
      %v938 = vpop.f32.mrf.mxu0
      %v939 = vadd.f32 0.0, %v938
      %v940 = vpop.f32.mrf.mxu0
      %941 = vmatprep.mubr.bf16.mxu0 %v542
      %942 = vmatmul.mubr.bf16.gmra.mxu0 %v541
      %v943 = vpop.f32.mrf.mxu0
      %v944 = vadd.f32 0.0, %v943
      %v945 = vpop.f32.mrf.mxu0
      %v946 = vpop.f32.mrf.mxu0
      %v947 = vadd.f32 0.0, %v946
      %v948 = vpop.f32.mrf.mxu0
      %949 = vmatprep.mubr.bf16.mxu0 %v544
      %950 = vmatmul.mubr.bf16.gmra.mxu0 %v543
      %v951 = vpop.f32.mrf.mxu0
      %v952 = vadd.f32 0.0, %v951
      %v953 = vpop.f32.mrf.mxu0
      %v954 = vpop.f32.mrf.mxu0
      %v955 = vadd.f32 0.0, %v954
      %v956 = vpop.f32.mrf.mxu0
      %957 = vmatprep.mubr.bf16.mxu0 %v546
      %958 = vmatmul.mubr.bf16.gmra.mxu0 %v545
      %v959 = vpop.f32.mrf.mxu0
      %v960 = vadd.f32 0.0, %v959
      %v961 = vpop.f32.mrf.mxu0
      %v962 = vpop.f32.mrf.mxu0
      %v963 = vadd.f32 0.0, %v962
      %v964 = vpop.f32.mrf.mxu0
      %965 = vmatprep.mubr.bf16.mxu0 %v548
      %966 = vmatmul.mubr.bf16.gmra.mxu0 %v547
      %v967 = vpop.f32.mrf.mxu0
      %v968 = vadd.f32 0.0, %v967
      %v969 = vpop.f32.mrf.mxu0
      %v970 = vpop.f32.mrf.mxu0
      %v971 = vadd.f32 0.0, %v970
      %v972 = vpop.f32.mrf.mxu0
      %973 = vmatprep.mubr.bf16.mxu0 %v550
      %974 = vmatmul.mubr.bf16.gmra.mxu0 %v549
      %v975 = vpop.f32.mrf.mxu0
      %v976 = vadd.f32 0.0, %v975
      %v977 = vpop.f32.mrf.mxu0
      %v978 = vpop.f32.mrf.mxu0
      %v979 = vadd.f32 0.0, %v978
      %v980 = vpop.f32.mrf.mxu0
      %981 = vmatprep.mubr.bf16.mxu0 %v552
      %982 = vmatmul.mubr.bf16.gmra.mxu0 %v551
      %v983 = vpop.f32.mrf.mxu0
      %v984 = vadd.f32 0.0, %v983
      %v985 = vpop.f32.mrf.mxu0
      %v986 = vpop.f32.mrf.mxu0
      %v987 = vadd.f32 0.0, %v986
      %v988 = vpop.f32.mrf.mxu0
      %989 = vmatprep.mubr.bf16.mxu0 %v554
      %990 = vmatmul.mubr.bf16.gmra.mxu0 %v553
      %v991 = vpop.f32.mrf.mxu0
      %v992 = vadd.f32 0.0, %v991
      %v993 = vpop.f32.mrf.mxu0
      %v994 = vpop.f32.mrf.mxu0
      %v995 = vadd.f32 0.0, %v994
      %v996 = vpop.f32.mrf.mxu0
      %997 = vmatprep.mubr.bf16.mxu0 %v556
      %998 = vmatmul.mubr.bf16.gmra.mxu0 %v555
      %v999 = vpop.f32.mrf.mxu0
      %v1000 = vadd.f32 0.0, %v999
      %v1001 = vpop.f32.mrf.mxu0
      %v1002 = vpop.f32.mrf.mxu0
      %v1003 = vadd.f32 0.0, %v1002
      %v1004 = vpop.f32.mrf.mxu0
      %1005 = vdwg.mxu0
      %v1006 = vld [vmem:[%s2] sm:$0x1]
      %v1008 = vlaneseq
      %v1009 = vshrl.u32 %v1008, 7
      %v1010 = vsub.s32 0, %v1009
      %v1011 = vrot.slane %v1006, %v1010
      %v1013 = vmul.f32 %v752, %v1011
      %v1014 = vmul.f32 %v755, %v1011
      %v1015 = vmul.f32 %v760, %v1011
      %v1016 = vmul.f32 %v763, %v1011
      %v1017 = vmul.f32 %v768, %v1011
      %v1018 = vmul.f32 %v771, %v1011
      %v1019 = vmul.f32 %v776, %v1011
      %v1020 = vmul.f32 %v779, %v1011
      %v1021 = vmul.f32 %v784, %v1011
      %v1022 = vmul.f32 %v787, %v1011
      %v1023 = vmul.f32 %v792, %v1011
      %v1024 = vmul.f32 %v795, %v1011
      %v1025 = vmul.f32 %v800, %v1011
      %v1026 = vmul.f32 %v803, %v1011
      %v1027 = vmul.f32 %v808, %v1011
      %v1028 = vmul.f32 %v811, %v1011
      %v1029 = vmul.f32 %v816, %v1011
      %v1030 = vmul.f32 %v819, %v1011
      %v1031 = vmul.f32 %v824, %v1011
      %v1032 = vmul.f32 %v827, %v1011
      %v1033 = vmul.f32 %v832, %v1011
      %v1034 = vmul.f32 %v835, %v1011
      %v1035 = vmul.f32 %v840, %v1011
      %v1036 = vmul.f32 %v843, %v1011
      %v1037 = vmul.f32 %v848, %v1011
      %v1038 = vmul.f32 %v851, %v1011
      %v1039 = vmul.f32 %v856, %v1011
      %v1040 = vmul.f32 %v859, %v1011
      %v1041 = vmul.f32 %v864, %v1011
      %v1042 = vmul.f32 %v867, %v1011
      %v1043 = vmul.f32 %v872, %v1011
      %v1044 = vmul.f32 %v875, %v1011
      %v1045 = vmul.f32 %v880, %v1011
      %v1046 = vmul.f32 %v883, %v1011
      %v1047 = vmul.f32 %v888, %v1011
      %v1048 = vmul.f32 %v891, %v1011
      %v1049 = vmul.f32 %v896, %v1011
      %v1050 = vmul.f32 %v899, %v1011
      %v1051 = vmul.f32 %v904, %v1011
      %v1052 = vmul.f32 %v907, %v1011
      %v1053 = vmul.f32 %v912, %v1011
      %v1054 = vmul.f32 %v915, %v1011
      %v1055 = vmul.f32 %v920, %v1011
      %v1056 = vmul.f32 %v923, %v1011
      %v1057 = vmul.f32 %v928, %v1011
      %v1058 = vmul.f32 %v931, %v1011
      %v1059 = vmul.f32 %v936, %v1011
      %v1060 = vmul.f32 %v939, %v1011
      %v1061 = vmul.f32 %v944, %v1011
      %v1062 = vmul.f32 %v947, %v1011
      %v1063 = vmul.f32 %v952, %v1011
      %v1064 = vmul.f32 %v955, %v1011
      %v1065 = vmul.f32 %v960, %v1011
      %v1066 = vmul.f32 %v963, %v1011
      %v1067 = vmul.f32 %v968, %v1011
      %v1068 = vmul.f32 %v971, %v1011
      %v1069 = vmul.f32 %v976, %v1011
      %v1070 = vmul.f32 %v979, %v1011
      %v1071 = vmul.f32 %v984, %v1011
      %v1072 = vmul.f32 %v987, %v1011
      %v1073 = vmul.f32 %v992, %v1011
      %v1074 = vmul.f32 %v995, %v1011
      %v1075 = vmul.f32 %v1000, %v1011
      %v1076 = vmul.f32 %v1003, %v1011
      %v1077 = vld [vmem:[%s3] sm:$0x1]
      %v1079 = vlaneseq
      %v1080 = vshrl.u32 %v1079, 7
      %v1081 = vsub.s32 0, %v1080
      %v1082 = vrot.slane %v1077, %v1081
      %v1084 = vadd.f32 %v1013, %v1082
      %v1085 = vadd.f32 %v1014, %v1082
      %v1086 = vadd.f32 %v1015, %v1082
      %v1087 = vadd.f32 %v1016, %v1082
      %v1088 = vadd.f32 %v1017, %v1082
      %v1089 = vadd.f32 %v1018, %v1082
      %v1090 = vadd.f32 %v1019, %v1082
      %v1091 = vadd.f32 %v1020, %v1082
      %v1092 = vadd.f32 %v1021, %v1082
      %v1093 = vadd.f32 %v1022, %v1082
      %v1094 = vadd.f32 %v1023, %v1082
      %v1095 = vadd.f32 %v1024, %v1082
      %v1096 = vadd.f32 %v1025, %v1082
      %v1097 = vadd.f32 %v1026, %v1082
      %v1098 = vadd.f32 %v1027, %v1082
      %v1099 = vadd.f32 %v1028, %v1082
      %v1100 = vadd.f32 %v1029, %v1082
      %v1101 = vadd.f32 %v1030, %v1082
      %v1102 = vadd.f32 %v1031, %v1082
      %v1103 = vadd.f32 %v1032, %v1082
      %v1104 = vadd.f32 %v1033, %v1082
      %v1105 = vadd.f32 %v1034, %v1082
      %v1106 = vadd.f32 %v1035, %v1082
      %v1107 = vadd.f32 %v1036, %v1082
      %v1108 = vadd.f32 %v1037, %v1082
      %v1109 = vadd.f32 %v1038, %v1082
      %v1110 = vadd.f32 %v1039, %v1082
      %v1111 = vadd.f32 %v1040, %v1082
      %v1112 = vadd.f32 %v1041, %v1082
      %v1113 = vadd.f32 %v1042, %v1082
      %v1114 = vadd.f32 %v1043, %v1082
      %v1115 = vadd.f32 %v1044, %v1082
      %v1116 = vadd.f32 %v1045, %v1082
      %v1117 = vadd.f32 %v1046, %v1082
      %v1118 = vadd.f32 %v1047, %v1082
      %v1119 = vadd.f32 %v1048, %v1082
      %v1120 = vadd.f32 %v1049, %v1082
      %v1121 = vadd.f32 %v1050, %v1082
      %v1122 = vadd.f32 %v1051, %v1082
      %v1123 = vadd.f32 %v1052, %v1082
      %v1124 = vadd.f32 %v1053, %v1082
      %v1125 = vadd.f32 %v1054, %v1082
      %v1126 = vadd.f32 %v1055, %v1082
      %v1127 = vadd.f32 %v1056, %v1082
      %v1128 = vadd.f32 %v1057, %v1082
      %v1129 = vadd.f32 %v1058, %v1082
      %v1130 = vadd.f32 %v1059, %v1082
      %v1131 = vadd.f32 %v1060, %v1082
      %v1132 = vadd.f32 %v1061, %v1082
      %v1133 = vadd.f32 %v1062, %v1082
      %v1134 = vadd.f32 %v1063, %v1082
      %v1135 = vadd.f32 %v1064, %v1082
      %v1136 = vadd.f32 %v1065, %v1082
      %v1137 = vadd.f32 %v1066, %v1082
      %v1138 = vadd.f32 %v1067, %v1082
      %v1139 = vadd.f32 %v1068, %v1082
      %v1140 = vadd.f32 %v1069, %v1082
      %v1141 = vadd.f32 %v1070, %v1082
      %v1142 = vadd.f32 %v1071, %v1082
      %v1143 = vadd.f32 %v1072, %v1082
      %v1144 = vadd.f32 %v1073, %v1082
      %v1145 = vadd.f32 %v1074, %v1082
      %v1146 = vadd.f32 %v1075, %v1082
      %v1147 = vadd.f32 %v1076, %v1082
      %1148 = vst [vmem:[%s202] sm:$0xff] %v1084
      %1149 = vst [vmem:[%s202 + $0x8] sm:$0xff] %v1085
      %1150 = vst [vmem:[%s202 + $0x10] sm:$0xff] %v1086
      %1151 = vst [vmem:[%s202 + $0x18] sm:$0xff] %v1087
      %1152 = vst [vmem:[%s202 + $0x20] sm:$0xff] %v1088
      %1153 = vst [vmem:[%s202 + $0x28] sm:$0xff] %v1089
      %1154 = vst [vmem:[%s202 + $0x30] sm:$0xff] %v1090
      %1155 = vst [vmem:[%s202 + $0x38] sm:$0xff] %v1091
      %1156 = vst [vmem:[%s202 + $0x40] sm:$0xff] %v1092
      %1157 = vst [vmem:[%s202 + $0x48] sm:$0xff] %v1093
      %1158 = vst [vmem:[%s202 + $0x50] sm:$0xff] %v1094
      %1159 = vst [vmem:[%s202 + $0x58] sm:$0xff] %v1095
      %1160 = vst [vmem:[%s202 + $0x60] sm:$0xff] %v1096
      %1161 = vst [vmem:[%s202 + $0x68] sm:$0xff] %v1097
      %1162 = vst [vmem:[%s202 + $0x70] sm:$0xff] %v1098
      %1163 = vst [vmem:[%s202 + $0x78] sm:$0xff] %v1099
      %1164 = vst [vmem:[%s202 + $0x80] sm:$0xff] %v1100
      %1165 = vst [vmem:[%s202 + $0x88] sm:$0xff] %v1101
      %1166 = vst [vmem:[%s202 + $0x90] sm:$0xff] %v1102
      %1167 = vst [vmem:[%s202 + $0x98] sm:$0xff] %v1103
      %1168 = vst [vmem:[%s202 + $0xa0] sm:$0xff] %v1104
      %1169 = vst [vmem:[%s202 + $0xa8] sm:$0xff] %v1105
      %1170 = vst [vmem:[%s202 + $0xb0] sm:$0xff] %v1106
      %1171 = vst [vmem:[%s202 + $0xb8] sm:$0xff] %v1107
      %1172 = vst [vmem:[%s202 + $0xc0] sm:$0xff] %v1108
      %1173 = vst [vmem:[%s202 + $0xc8] sm:$0xff] %v1109
      %1174 = vst [vmem:[%s202 + $0xd0] sm:$0xff] %v1110
      %1175 = vst [vmem:[%s202 + $0xd8] sm:$0xff] %v1111
      %1176 = vst [vmem:[%s202 + $0xe0] sm:$0xff] %v1112
      %1177 = vst [vmem:[%s202 + $0xe8] sm:$0xff] %v1113
      %1178 = vst [vmem:[%s202 + $0xf0] sm:$0xff] %v1114
      %1179 = vst [vmem:[%s202 + $0xf8] sm:$0xff] %v1115
      %1180 = vst [vmem:[%s202 + $0x100] sm:$0xff] %v1116
      %1181 = vst [vmem:[%s202 + $0x108] sm:$0xff] %v1117
      %1182 = vst [vmem:[%s202 + $0x110] sm:$0xff] %v1118
      %1183 = vst [vmem:[%s202 + $0x118] sm:$0xff] %v1119
      %1184 = vst [vmem:[%s202 + $0x120] sm:$0xff] %v1120
      %1185 = vst [vmem:[%s202 + $0x128] sm:$0xff] %v1121
      %1186 = vst [vmem:[%s202 + $0x130] sm:$0xff] %v1122
      %1187 = vst [vmem:[%s202 + $0x138] sm:$0xff] %v1123
      %1188 = vst [vmem:[%s202 + $0x140] sm:$0xff] %v1124
      %1189 = vst [vmem:[%s202 + $0x148] sm:$0xff] %v1125
      %1190 = vst [vmem:[%s202 + $0x150] sm:$0xff] %v1126
      %1191 = vst [vmem:[%s202 + $0x158] sm:$0xff] %v1127
      %1192 = vst [vmem:[%s202 + $0x160] sm:$0xff] %v1128
      %1193 = vst [vmem:[%s202 + $0x168] sm:$0xff] %v1129
      %1194 = vst [vmem:[%s202 + $0x170] sm:$0xff] %v1130
      %1195 = vst [vmem:[%s202 + $0x178] sm:$0xff] %v1131
      %1196 = vst [vmem:[%s202 + $0x180] sm:$0xff] %v1132
      %1197 = vst [vmem:[%s202 + $0x188] sm:$0xff] %v1133
      %1198 = vst [vmem:[%s202 + $0x190] sm:$0xff] %v1134
      %1199 = vst [vmem:[%s202 + $0x198] sm:$0xff] %v1135
      %1200 = vst [vmem:[%s202 + $0x1a0] sm:$0xff] %v1136
      %1201 = vst [vmem:[%s202 + $0x1a8] sm:$0xff] %v1137
      %1202 = vst [vmem:[%s202 + $0x1b0] sm:$0xff] %v1138
      %1203 = vst [vmem:[%s202 + $0x1b8] sm:$0xff] %v1139
      %1204 = vst [vmem:[%s202 + $0x1c0] sm:$0xff] %v1140
      %1205 = vst [vmem:[%s202 + $0x1c8] sm:$0xff] %v1141
      %1206 = vst [vmem:[%s202 + $0x1d0] sm:$0xff] %v1142
      %1207 = vst [vmem:[%s202 + $0x1d8] sm:$0xff] %v1143
      %1208 = vst [vmem:[%s202 + $0x1e0] sm:$0xff] %v1144
      %1209 = vst [vmem:[%s202 + $0x1e8] sm:$0xff] %v1145
      %1210 = vst [vmem:[%s202 + $0x1f0] sm:$0xff] %v1146
      %1211 = vst [vmem:[%s202 + $0x1f8] sm:$0xff] %v1147
      %s1212 = smul.u32 64, %s15
      %p1213 = scmp.lt.s32.totalorder %s1212, 127
      %s1214 = scalar_select %p1213, %s1212, 127
      %s1215 = smul.addr %s1214, 8
      %s1216 = scalar_lea.vmem %s4, %s1215
      // Predicated region
      $region37: #{_lambda_.1} parent=35 // pred_check
        %p1217 = pneg %p122
      $region38: #{_lambda_.1} parent=35 // pred_check_branch
        %1219 = sbr.rel (%p1217) target = $region40
      $region39: #{_lambda_.1} parent=35 // pred_region
        %s1220 = smul.u32 64, %s15
      $region40: #{_lambda_.1} parent=35 // pred_fallthru
        _
    $region36: #{_lambda_.1} parent=5 // pred_fallthru
      _
    %p1221 = scmp.le.s32.totalorder 2, %s10
    // Predicated region
    $region41: #{_lambda_.1} parent=5 // pred_check
      %p1222 = pneg %p1221
    $region42: #{_lambda_.1} parent=5 // pred_check_branch
      %1224 = sbr.rel (%p1222) target = $region44
    $region43: #{_lambda_.1} parent=5 // pred_region
      %s1225 = ssub.s32 %s10, 2
      // Predicated region
      $region45: #{_lambda_.1} parent=43 // pred_check
        %p1226 = pneg %p128
      $region46: #{_lambda_.1} parent=43 // pred_check_branch
        %1228 = sbr.rel (%p1226) target = $region48
      $region47: #{_lambda_.1} parent=43 // pred_region
        %s1229 = smul.u32 64, %s16
        %p1230 = scmp.lt.s32.totalorder %s1229, 127
        %s1231 = scalar_select %p1230, %s1229, 127
        %s1232 = smul.addr %s1231, 8
        %s1233 = scalar_lea.vmem %s4, %s1232
      $region48: #{_lambda_.1} parent=43 // pred_fallthru
        _
    $region44: #{_lambda_.1} parent=5 // pred_fallthru
      _
  $region6: #{_lambda_.1} parent=0 // loop_footer
    %s14 = sadd.s32 1, %s10
  $region7: #{_lambda_.1} parent=0 // loop_footer_branch
    %9 = sbr.rel target = $region3
  $region8: #{_lambda_.1} parent=0 // loop_exit
    _

</llo_original>
